<compile_context>
chip_gen: v5e
topology: v5e:2x2
jax: 0.10.0
libtpu: 0.0.40
codegen_flags: <defaults>
</compile_context>

<pallas_src>
import jax
import jax.numpy as jnp
import numpy as np
from jax import lax
from jax.experimental import pallas as pl
from jax.experimental.pallas import tpu as pltpu


def _round_up(x, m):
    return ((x + m - 1) // m) * m


def _weight_norm(v, g):
    # PyTorch weight_norm (dim=0): w = g * v / ||v||, norm over all dims but 0.
    # v: (Cout, Cin, K), g: (Cout,)
    norm = jnp.sqrt(jnp.sum(v * v, axis=(1, 2), keepdims=True))
    return g.reshape(-1, 1, 1) * v / norm


# ---------------------------------------------------------------------------
# Pallas kernel: one (batch, time-tile) block of the ResnetBlock forward.
# ---------------------------------------------------------------------------
def _make_resnet_block_kernel(t_tile, dilation, C):
    K = 3
    d = dilation

    def kernel(x_ref, halo_ref, w1_ref, b1_ref, w2_ref, ws_ref, bout_ref, out_ref):
        x_bf = x_ref[0, :, :]                              # (t_tile, C) bf16
        halo = halo_ref[0, 0, :, :].astype(jnp.float32)    # (2d, C)

        # Stitch [left halo | tile | right halo] along time (VMEM-local copy,
        # replaces a full reflection-padded HBM copy of the input).
        x_f = x_bf.astype(jnp.float32)
        xp = jnp.concatenate([halo[:d], x_f, halo[d:]], axis=0)   # (t_tile+2d, C)

        # LeakyReLU(0.2); commutes with reflection padding (pointwise op).
        h = jnp.where(xp >= 0, xp, 0.2 * xp)

        # Stack the 3 dilated taps along the contraction dim -> one MXU matmul
        # (t_tile, 3C) @ (3C, C), accumulated in f32.
        hcat = jnp.concatenate(
            [h[k * d:k * d + t_tile, :] for k in range(K)], axis=1)
        y1 = jnp.dot(hcat.astype(jnp.bfloat16), w1_ref[...],
                     preferred_element_type=jnp.float32) + b1_ref[...]

        h2 = jnp.where(y1 >= 0, y1, 0.2 * y1).astype(jnp.bfloat16)
        blk = jnp.dot(h2, w2_ref[...], preferred_element_type=jnp.float32)

        # Shortcut 1x1 conv on the original (un-activated) tile.
        sc = jnp.dot(x_bf, ws_ref[...], preferred_element_type=jnp.float32)

        # b2 + bs folded into a single bias added at the final store.
        out_ref[0, :, :] = (sc + blk + bout_ref[...]).astype(out_ref.dtype)

    return kernel


# ---------------------------------------------------------------------------
# Tiny plain-JAX glue (O(n_tiles * dil * C) work, no full-tensor HBM passes).
# ---------------------------------------------------------------------------
def _extend_time(x_ntc, T_pad, d):
    """Pad the time axis from T to T_pad.  Positions [T, T+d) hold the right
    reflection (they are read by valid outputs near the sequence end); anything
    beyond is never read by a valid output and is zero-filled."""
    B, T, C = x_ntc.shape
    if T_pad == T:
        return x_ntc
    g = jnp.arange(T, T_pad)
    refl = jnp.clip(2 * T - 2 - g, 0, T - 1)
    ext = x_ntc[:, refl, :]
    ext = jnp.where((g < T + d)[None, :, None], ext, jnp.zeros_like(ext))
    return jnp.concatenate([x_ntc, ext], axis=1)


def _build_halos(x_ntc, t_tile, nt, d):
    """(B, nt, 2d, C): per-tile left/right halo time steps, with reflection
    applied at the sequence boundaries."""
    B, T, C = x_ntc.shape
    i = jnp.arange(nt)
    g_left = i[:, None] * t_tile - d + jnp.arange(d)[None, :]        # (nt, d)
    g_right = (i[:, None] + 1) * t_tile + jnp.arange(d)[None, :]     # (nt, d)
    g = jnp.concatenate([g_left, g_right], axis=1)                   # (nt, 2d)
    refl = jnp.where(g < 0, -g, jnp.where(g >= T, 2 * T - 2 - g, g))
    refl = jnp.clip(refl, 0, T - 1)
    vals = x_ntc[:, refl, :]                                         # (B, nt, 2d, C)
    valid = (g < T + d)[None, :, :, None]
    return jnp.where(valid, vals, jnp.zeros_like(vals))


# ---------------------------------------------------------------------------
# Forward wrappers.
# ---------------------------------------------------------------------------
def resnet_block_forward_ntc(x_ntc, params, dilation=1, time_tile=512):
    """Optimized path. x_ntc: (B, T, C). Returns (B, T, C) bfloat16."""
    B, T, C = x_ntc.shape
    d = int(dilation)

    # bf16 HBM I/O (accumulation stays f32 inside the kernel).
    # TODO(synk): in a real model keep activations bf16 end-to-end to avoid this cast.
    x_bf = x_ntc.astype(jnp.bfloat16)

    t_tile = min(_round_up(time_tile, 16), _round_up(T, 16))
    nt = -(-T // t_tile)
    T_pad = nt * t_tile

    x_main = _extend_time(x_bf, T_pad, d)           # (B, T_pad, C)
    halos = _build_halos(x_bf, t_tile, nt, d)       # (B, nt, 2d, C)

    # Weight-norm materialization (tiny); bf16 MXU weights, f32 biases.
    w1 = _weight_norm(params['v1'], params['g1'])   # (C, C, 3)
    w2 = _weight_norm(params['v2'], params['g2'])   # (C, C, 1)
    ws = _weight_norm(params['vs'], params['gs'])   # (C, C, 1)
    w1_stk = jnp.transpose(w1, (2, 1, 0)).reshape(3 * C, C).astype(jnp.bfloat16)
    w2_m = jnp.transpose(w2[:, :, 0], (1, 0)).astype(jnp.bfloat16)
    ws_m = jnp.transpose(ws[:, :, 0], (1, 0)).astype(jnp.bfloat16)
    b1 = params['b1'].reshape(1, C).astype(jnp.float32)
    bout = (params['b2'] + params['bs']).reshape(1, C).astype(jnp.float32)

    kernel = _make_resnet_block_kernel(t_tile, d, C)
    # TODO(synk): for production C < 128, pad channels to 128 (or fold C into the
    # lane dim) so output stores are lane-dense instead of masked vst.msk.
    out = pl.pallas_call(
        kernel,
        out_shape=jax.ShapeDtypeStruct((B, T_pad, C), jnp.bfloat16),
        grid=(B, nt),
        in_specs=[
            pl.BlockSpec((1, t_tile, C), lambda b, i: (b, i, 0)),       # x tile
            pl.BlockSpec((1, 1, 2 * d, C), lambda b, i: (b, i, 0, 0)),  # halos
            pl.BlockSpec((3 * C, C), lambda b, i: (0, 0)),              # w1 stacked
            pl.BlockSpec((1, C), lambda b, i: (0, 0)),                  # b1
            pl.BlockSpec((C, C), lambda b, i: (0, 0)),                  # w2
            pl.BlockSpec((C, C), lambda b, i: (0, 0)),                  # ws
            pl.BlockSpec((1, C), lambda b, i: (0, 0)),                  # b2 + bs
        ],
        out_specs=pl.BlockSpec((1, t_tile, C), lambda b, i: (b, i, 0)),
        compiler_params=pltpu.CompilerParams(
            dimension_semantics=("parallel", "parallel"),
            vmem_limit_bytes=48 * 1024 * 1024,   # headroom under v7x's 64 MiB VMEM
        ),
    )(x_main, halos, w1_stk, b1, w2_m, ws_m, bout)

    if T_pad != T:
        out = out[:, :T, :]
    return out


def resnet_block_forward(x_nct, params, dilation=1, time_tile=512):
    """PyTorch-interface wrapper: (B, C, T) -> (B, C, T).
    A full MelGAN stack should stay in NTC and transpose only once at model
    entry/exit instead of per block."""
    x_ntc = jnp.transpose(x_nct, (0, 2, 1))
    y = resnet_block_forward_ntc(x_ntc, params, dilation=dilation,
                                 time_tile=time_tile)
    return jnp.transpose(y, (0, 2, 1))


# ---------------------------------------------------------------------------
# Pure-JAX f32 reference (lax.conv) matching the PyTorch module exactly.
# ---------------------------------------------------------------------------
def resnet_block_reference(x, params, dilation=1):
    d = dilation
    C = x.shape[1]
    w1 = _weight_norm(params['v1'], params['g1'])
    w2 = _weight_norm(params['v2'], params['g2'])
    ws = _weight_norm(params['vs'], params['gs'])
    dn = ('NCH', 'OIH', 'NCH')

    def conv(inp, w, b, rhs_dil):
        y = lax.conv_general_dilated(inp, w, window_strides=(1,),
                                     padding='VALID', rhs_dilation=(rhs_dil,),
                                     dimension_numbers=dn)
        return y + b.reshape(1, C, 1)

    h = jax.nn.leaky_relu(x, 0.2)
    h = jnp.pad(h, ((0, 0), (0, 0), (d, d)), mode='reflect')
    h = conv(h, w1, params['b1'], d)
    h = jax.nn.leaky_relu(h, 0.2)
    h = conv(h, w2, params['b2'], 1)
    s = conv(x, ws, params['bs'], 1)
    return s + h


# ---------------------------------------------------------------------------
# Demo / correctness check.
# ---------------------------------------------------------------------------
def _make_params(key, C):
    ks = jax.random.split(key, 9)
    return {
        'v1': jax.random.normal(ks[0], (C, C, 3), jnp.float32) * 0.1,
        'g1': jax.random.uniform(ks[1], (C,), jnp.float32, 0.5, 1.5),
        'b1': jax.random.normal(ks[2], (C,), jnp.float32) * 0.1,
        'v2': jax.random.normal(ks[3], (C, C, 1), jnp.float32) * 0.1,
        'g2': jax.random.uniform(ks[4], (C,), jnp.float32, 0.5, 1.5),
        'b2': jax.random.normal(ks[5], (C,), jnp.float32) * 0.1,
        'vs': jax.random.normal(ks[6], (C, C, 1), jnp.float32) * 0.1,
        'gs': jax.random.uniform(ks[7], (C,), jnp.float32, 0.5, 1.5),
        'bs': jax.random.normal(ks[8], (C,), jnp.float32) * 0.1,
    }


def _run_case(key, B, C, T, dilation, time_tile):
    kp, kx = jax.random.split(key)
    params = _make_params(kp, C)
    x = jax.random.normal(kx, (B, C, T), jnp.float32)

    out = resnet_block_forward(x, params, dilation=dilation, time_tile=time_tile)
    out = jax.block_until_ready(out)
    ref = jax.block_until_ready(resnet_block_reference(x, params, dilation=dilation))

    # bf16 I/O + bf16 MXU inputs (f32 accumulation) -> relaxed tolerance.
    np.testing.assert_allclose(np.asarray(out.astype(jnp.float32)),
                               np.asarray(ref), rtol=5e-2, atol=5e-2)


if __name__ == "__main__":
    root = jax.random.PRNGKey(0)
    k1, k2 = jax.random.split(root)

    # Case 1: dilation=1, T divisible by the time tile (3 time tiles per batch).
    _run_case(k1, B=2, C=32, T=192, dilation=1, time_tile=64)
    # Case 2: dilation=3, ragged T (exercises halo reflection + tail extension).
    _run_case(k2, B=2, C=32, T=200, dilation=3, time_tile=64)

    print("KERNEL_OK")
</pallas_src>

<mosaic_0001>
module attributes {stable_mosaic.version = 11 : i64} {
  func.func @kernel(%arg0: i32, %arg1: i32, %arg2: memref<1x64x32xbf16, #tpu.memory_space<vmem>>, %arg3: memref<1x1x2x32xbf16, #tpu.memory_space<vmem>>, %arg4: memref<96x32xbf16, #tpu.memory_space<vmem>>, %arg5: memref<1x32xf32, #tpu.memory_space<vmem>>, %arg6: memref<32x32xbf16, #tpu.memory_space<vmem>>, %arg7: memref<32x32xbf16, #tpu.memory_space<vmem>>, %arg8: memref<1x32xf32, #tpu.memory_space<vmem>>, %arg9: memref<1x64x32xbf16, #tpu.memory_space<vmem>>) attributes {dimension_semantics = [#tpu.dimension_semantics<parallel>, #tpu.dimension_semantics<parallel>], iteration_bounds = array<i64: 2, 3>, scalar_prefetch = 0 : i64, scratch_operands = 0 : i64, tpu.core_type = #tpu.core_type<tc>, window_params = [{transform_indices = @transform_0, window_bounds = array<i64: 1, 64, 32>}, {transform_indices = @transform_1, window_bounds = array<i64: 1, 1, 2, 32>}, {pipeline_mode = #tpu.pipeline_mode<synchronous>, transform_indices = @transform_2, window_bounds = array<i64: 96, 32>}, {pipeline_mode = #tpu.pipeline_mode<synchronous>, transform_indices = @transform_3, window_bounds = array<i64: 1, 32>}, {pipeline_mode = #tpu.pipeline_mode<synchronous>, transform_indices = @transform_4, window_bounds = array<i64: 32, 32>}, {pipeline_mode = #tpu.pipeline_mode<synchronous>, transform_indices = @transform_5, window_bounds = array<i64: 32, 32>}, {pipeline_mode = #tpu.pipeline_mode<synchronous>, transform_indices = @transform_6, window_bounds = array<i64: 1, 32>}, {transform_indices = @transform_7, window_bounds = array<i64: 1, 64, 32>}]} {
    %c0 = arith.constant 0 : index
    %c0_0 = arith.constant 0 : index
    %c0_1 = arith.constant 0 : index
    %0 = vector.load %arg2[%c0, %c0_0, %c0_1] : memref<1x64x32xbf16, #tpu.memory_space<vmem>>, vector<1x64x32xbf16>
    %1 = vector.shape_cast %0 : vector<1x64x32xbf16> to vector<64x32xbf16>
    %c0_2 = arith.constant 0 : index
    %c0_3 = arith.constant 0 : index
    %c0_4 = arith.constant 0 : index
    %c0_5 = arith.constant 0 : index
    %2 = vector.load %arg3[%c0_2, %c0_3, %c0_4, %c0_5] : memref<1x1x2x32xbf16, #tpu.memory_space<vmem>>, vector<1x1x2x32xbf16>
    %3 = vector.shape_cast %2 : vector<1x1x2x32xbf16> to vector<2x32xbf16>
    %4 = arith.extf %3 : vector<2x32xbf16> to vector<2x32xf32>
    %5 = arith.extf %1 : vector<64x32xbf16> to vector<64x32xf32>
    %6 = vector.extract_strided_slice %4 {offsets = [0, 0], sizes = [1, 32], strides = [1, 1]} : vector<2x32xf32> to vector<1x32xf32>
    %7 = vector.extract_strided_slice %4 {offsets = [1, 0], sizes = [1, 32], strides = [1, 1]} : vector<2x32xf32> to vector<1x32xf32>
    %8 = tpu.concatenate %6, %5, %7 in 0 : vector<1x32xf32>, vector<64x32xf32>, vector<1x32xf32> -> vector<66x32xf32>
    %cst = arith.constant 0.000000e+00 : f32
    %9 = vector.broadcast %cst : f32 to vector<66x32xf32>
    %10 = arith.cmpf oge, %8, %9 : vector<66x32xf32>
    %cst_6 = arith.constant 2.000000e-01 : f32
    %11 = vector.broadcast %cst_6 : f32 to vector<66x32xf32>
    %12 = arith.mulf %11, %8 : vector<66x32xf32>
    %13 = arith.select %10, %8, %12 : vector<66x32xi1>, vector<66x32xf32>
    %14 = vector.extract_strided_slice %13 {offsets = [0, 0], sizes = [64, 32], strides = [1, 1]} : vector<66x32xf32> to vector<64x32xf32>
    %15 = vector.extract_strided_slice %13 {offsets = [1, 0], sizes = [64, 32], strides = [1, 1]} : vector<66x32xf32> to vector<64x32xf32>
    %16 = vector.extract_strided_slice %13 {offsets = [2, 0], sizes = [64, 32], strides = [1, 1]} : vector<66x32xf32> to vector<64x32xf32>
    %17 = tpu.concatenate %14, %15, %16 in 1 : vector<64x32xf32>, vector<64x32xf32>, vector<64x32xf32> -> vector<64x96xf32>
    %18 = arith.truncf %17 : vector<64x96xf32> to vector<64x96xbf16>
    %c0_7 = arith.constant 0 : index
    %c0_8 = arith.constant 0 : index
    %19 = vector.load %arg4[%c0_7, %c0_8] : memref<96x32xbf16, #tpu.memory_space<vmem>>, vector<96x32xbf16>
    %cst_9 = arith.constant dense<0.000000e+00> : vector<64x32xf32>
    %20 = tpu.matmul %18, %19, %cst_9 {dimension_numbers = #tpu.dot_dimension_numbers<[1], [0], [0], [1], [0, 0, 1, 1], [], []>} : vector<64x96xbf16>, vector<96x32xbf16>, vector<64x32xf32> -> vector<64x32xf32>
    %c0_10 = arith.constant 0 : index
    %c0_11 = arith.constant 0 : index
    %21 = vector.load %arg5[%c0_10, %c0_11] : memref<1x32xf32, #tpu.memory_space<vmem>>, vector<1x32xf32>
    %22 = vector.broadcast %21 : vector<1x32xf32> to vector<64x32xf32>
    %23 = arith.addf %20, %22 : vector<64x32xf32>
    %cst_12 = arith.constant 0.000000e+00 : f32
    %24 = vector.broadcast %cst_12 : f32 to vector<64x32xf32>
    %25 = arith.cmpf oge, %23, %24 : vector<64x32xf32>
    %cst_13 = arith.constant 2.000000e-01 : f32
    %26 = vector.broadcast %cst_13 : f32 to vector<64x32xf32>
    %27 = arith.mulf %26, %23 : vector<64x32xf32>
    %28 = arith.select %25, %23, %27 : vector<64x32xi1>, vector<64x32xf32>
    %29 = arith.truncf %28 : vector<64x32xf32> to vector<64x32xbf16>
    %c0_14 = arith.constant 0 : index
    %c0_15 = arith.constant 0 : index
    %30 = vector.load %arg6[%c0_14, %c0_15] : memref<32x32xbf16, #tpu.memory_space<vmem>>, vector<32x32xbf16>
    %cst_16 = arith.constant dense<0.000000e+00> : vector<64x32xf32>
    %31 = tpu.matmul %29, %30, %cst_16 {dimension_numbers = #tpu.dot_dimension_numbers<[1], [0], [0], [1], [0, 0, 1, 1], [], []>} : vector<64x32xbf16>, vector<32x32xbf16>, vector<64x32xf32> -> vector<64x32xf32>
    %c0_17 = arith.constant 0 : index
    %c0_18 = arith.constant 0 : index
    %32 = vector.load %arg7[%c0_17, %c0_18] : memref<32x32xbf16, #tpu.memory_space<vmem>>, vector<32x32xbf16>
    %cst_19 = arith.constant dense<0.000000e+00> : vector<64x32xf32>
    %33 = tpu.matmul %1, %32, %cst_19 {dimension_numbers = #tpu.dot_dimension_numbers<[1], [0], [0], [1], [0, 0, 1, 1], [], []>} : vector<64x32xbf16>, vector<32x32xbf16>, vector<64x32xf32> -> vector<64x32xf32>
    %34 = arith.addf %33, %31 : vector<64x32xf32>
    %c0_20 = arith.constant 0 : index
    %c0_21 = arith.constant 0 : index
    %35 = vector.load %arg8[%c0_20, %c0_21] : memref<1x32xf32, #tpu.memory_space<vmem>>, vector<1x32xf32>
    %36 = vector.broadcast %35 : vector<1x32xf32> to vector<64x32xf32>
    %37 = arith.addf %34, %36 : vector<64x32xf32>
    %38 = arith.truncf %37 : vector<64x32xf32> to vector<64x32xbf16>
    %c0_22 = arith.constant 0 : index
    %c0_23 = arith.constant 0 : index
    %c0_24 = arith.constant 0 : index
    %39 = vector.load %arg9[%c0_22, %c0_23, %c0_24] : memref<1x64x32xbf16, #tpu.memory_space<vmem>>, vector<1x64x32xbf16>
    %40 = vector.shape_cast %39 : vector<1x64x32xbf16> to vector<64x32xbf16>
    %41 = vector.shape_cast %38 : vector<64x32xbf16> to vector<1x64x32xbf16>
    tpu.vector_store %arg9[%c0_22, %c0_23, %c0_24], %41 {strides = array<i32>} : memref<1x64x32xbf16, #tpu.memory_space<vmem>>, vector<1x64x32xbf16>,
    return
  }
  func.func @transform_0(%arg0: i32, %arg1: i32) -> (i32, i32, i32) {
    %c0_i32 = arith.constant 0 : i32
    %c0_i32_0 = arith.constant 0 : i32
    return %arg0, %arg1, %c0_i32 : i32, i32, i32
  }
  func.func @transform_1(%arg0: i32, %arg1: i32) -> (i32, i32, i32, i32) {
    %c0_i32 = arith.constant 0 : i32
    %c0_i32_0 = arith.constant 0 : i32
    %c0_i32_1 = arith.constant 0 : i32
    return %arg0, %arg1, %c0_i32, %c0_i32_0 : i32, i32, i32, i32
  }
  func.func @transform_2(%arg0: i32, %arg1: i32) -> (i32, i32) {
    %c0_i32 = arith.constant 0 : i32
    %c0_i32_0 = arith.constant 0 : i32
    %c0_i32_1 = arith.constant 0 : i32
    return %c0_i32, %c0_i32_0 : i32, i32
  }
  func.func @transform_3(%arg0: i32, %arg1: i32) -> (i32, i32) {
    %c0_i32 = arith.constant 0 : i32
    %c0_i32_0 = arith.constant 0 : i32
    %c0_i32_1 = arith.constant 0 : i32
    return %c0_i32, %c0_i32_0 : i32, i32
  }
  func.func @transform_4(%arg0: i32, %arg1: i32) -> (i32, i32) {
    %c0_i32 = arith.constant 0 : i32
    %c0_i32_0 = arith.constant 0 : i32
    %c0_i32_1 = arith.constant 0 : i32
    return %c0_i32, %c0_i32_0 : i32, i32
  }
  func.func @transform_5(%arg0: i32, %arg1: i32) -> (i32, i32) {
    %c0_i32 = arith.constant 0 : i32
    %c0_i32_0 = arith.constant 0 : i32
    %c0_i32_1 = arith.constant 0 : i32
    return %c0_i32, %c0_i32_0 : i32, i32
  }
  func.func @transform_6(%arg0: i32, %arg1: i32) -> (i32, i32) {
    %c0_i32 = arith.constant 0 : i32
    %c0_i32_0 = arith.constant 0 : i32
    %c0_i32_1 = arith.constant 0 : i32
    return %c0_i32, %c0_i32_0 : i32, i32
  }
  func.func @transform_7(%arg0: i32, %arg1: i32) -> (i32, i32, i32) {
    %c0_i32 = arith.constant 0 : i32
    %c0_i32_0 = arith.constant 0 : i32
    return %arg0, %arg1, %c0_i32 : i32, i32, i32
  }
}

</mosaic_0001>

<llo_original>
// kernel: tpu_custom_call.1
$region0: #{tpu_custom_call.1}
  #allocation0 [shape = 'u32[]', space=smem, size = 0x4, offset = 0x4, fixed_abs, tag = 'smem constant byte address 0x4 - core index']
  #allocation1 [shape = 'u32[72,128]{1,0:T(1,128)}', space=vmem, size = 0x9000, scoped, tag = 'internal scratch']
  %s0 = inlined_call_operand.vmem [shape: bf16[2,192,32], index: 0, kind: input, shape index: {}]
  %s1 = inlined_call_operand.vmem [shape: bf16[2,3,2,32], index: 1, kind: input, shape index: {}]
  %s2 = inlined_call_operand.vmem [shape: bf16[96,32], index: 2, kind: input, shape index: {}]
  %s3 = inlined_call_operand.vmem [shape: f32[1,32], index: 3, kind: input, shape index: {}]
  %s4 = inlined_call_operand.vmem [shape: bf16[32,32], index: 4, kind: input, shape index: {}]
  %s5 = inlined_call_operand.vmem [shape: bf16[32,32], index: 5, kind: input, shape index: {}]
  %s6 = inlined_call_operand.vmem [shape: f32[1,32], index: 6, kind: input, shape index: {}]
  %s7 = inlined_call_operand.vmem [shape: bf16[2,192,32], index: 7, kind: output, shape index: {}]
  %s8 = sld [smem:[#allocation0]]
  $region61: #{tpu_custom_call.1} parent=0
    _
  %s10 = ssub.s32 1, %s8
  %s11 = scalar_select 0, %s10, %s8
  loop: start=0, step=1, limit=8
  $region2: #{tpu_custom_call.1} parent=0 // loop_pre_header
    _
  $region3: #{tpu_custom_call.1} parent=0 // loop_header
    %s13 = sphi 0, %s17
    %p14 = scmp.ge.s32.totalorder %s13, 8
    %s20 = sphi 0, %s32
    %s21 = sphi 0, %s28
    %s22 = sphi 0, %s20
    %s23 = sphi 0, %s21
    %s24 = sphi 0, %s22
    %s25 = sphi 0, %s23
    %s37 = sphi 0, %s39
    %s40 = sphi 0, %s37
    %s41 = sphi 0, %s40
    %s57 = sphi 0, %s41
    %s65 = sphi 0, %s67
    %s68 = sphi 0, %s65
    %s69 = sphi 0, %s68
    %s85 = sphi 0, %s69
    %s89 = sphi 0, %s89
    %s91 = sphi 0, %s89
    %s92 = sphi 0, %s91
    %s106 = sphi 0, %s92
    %s110 = sphi 0, %s110
    %s112 = sphi 0, %s110
    %s113 = sphi 0, %s112
    %s127 = sphi 0, %s113
    %s131 = sphi 0, %s131
    %s133 = sphi 0, %s131
    %s134 = sphi 0, %s133
    %s148 = sphi 0, %s134
    %s152 = sphi 0, %s152
    %s154 = sphi 0, %s152
    %s155 = sphi 0, %s154
    %s169 = sphi 0, %s155
    %s173 = sphi 0, %s173
    %s175 = sphi 0, %s173
    %s176 = sphi 0, %s175
    %s190 = sphi 0, %s176
    %s198 = sphi 0, %s200
    %s201 = sphi 0, %s198
    %s202 = sphi 0, %s201
    %s218 = sphi 0, %s202
  $region4: #{tpu_custom_call.1} parent=0 // loop_header_branch
    %16 = sbr.rel (%p14) target = $region8
  $region5: #{tpu_custom_call.1} parent=0 // loop_body
    %s18 = ssub.s32 %s13, 1
    %s19 = ssub.s32 %s13, 2
    %s26 = sadd.s32 1, %s21
    %p27 = scmp.ge.s32.totalorder %s26, 3
    %s28 = scalar_select %p27, 0, %s26
    %s29 = sadd.s32 1, %s20
    %s30 = scalar_select %p27, %s29, %s20
    %p31 = scmp.ge.s32.totalorder %s30, 2
    %s32 = scalar_select %p31, 0, %s30
    %s33 = ssub.s32 %s20, %s32
    %s34 = ssub.s32 %s21, %s28
    %s35 = sor.u32 %s33, %s34
    %p36 = scmp.eq.s32.totalorder %s35, 0
    %s38 = sadd.s32 %s37, 1
    %s39 = scalar_select %p36, %s37, %s38
    %p42 = pneg %p36
    %p43 = scmp.eq.s32.totalorder %s13, 5
    %p44 = por %p42, %p43
    %p45 = scmp.ne.s32.totalorder %s37, %s40
    %p46 = scmp.eq.s32.totalorder %s13, 0
    %p47 = por %p45, %p46
    %p48 = scmp.ne.s32.totalorder %s37, %s40
    %p49 = scmp.eq.s32.totalorder %s18, 5
    %p50 = por %p48, %p49
    %p51 = scmp.ne.s32.totalorder %s40, %s41
    %p52 = scmp.eq.s32.totalorder %s18, 0
    %p53 = por %p51, %p52
    %p54 = scmp.ne.s32.totalorder %s40, %s41
    %p55 = scmp.eq.s32.totalorder %s19, 5
    %p56 = por %p54, %p55
    %p58 = scmp.ne.s32.totalorder %s41, %s57
    %p59 = scmp.eq.s32.totalorder %s19, 0
    %p60 = por %p58, %p59
    %s61 = ssub.s32 %s20, %s32
    %s62 = ssub.s32 %s21, %s28
    %s63 = sor.u32 %s61, %s62
    %p64 = scmp.eq.s32.totalorder %s63, 0
    %s66 = sadd.s32 %s65, 1
    %s67 = scalar_select %p64, %s65, %s66
    %p70 = pneg %p64
    %p71 = scmp.eq.s32.totalorder %s13, 5
    %p72 = por %p70, %p71
    %p73 = scmp.ne.s32.totalorder %s65, %s68
    %p74 = scmp.eq.s32.totalorder %s13, 0
    %p75 = por %p73, %p74
    %p76 = scmp.ne.s32.totalorder %s65, %s68
    %p77 = scmp.eq.s32.totalorder %s18, 5
    %p78 = por %p76, %p77
    %p79 = scmp.ne.s32.totalorder %s68, %s69
    %p80 = scmp.eq.s32.totalorder %s18, 0
    %p81 = por %p79, %p80
    %p82 = scmp.ne.s32.totalorder %s68, %s69
    %p83 = scmp.eq.s32.totalorder %s19, 5
    %p84 = por %p82, %p83
    %p86 = scmp.ne.s32.totalorder %s69, %s85
    %p87 = scmp.eq.s32.totalorder %s19, 0
    %p88 = por %p86, %p87
    %s90 = sadd.s32 %s89, 1
    %p93 = scmp.eq.s32.totalorder %s13, 5
    %p94 = scmp.ne.s32.totalorder %s89, %s91
    %p95 = scmp.eq.s32.totalorder %s13, 0
    %p96 = por %p94, %p95
    %p97 = scmp.ne.s32.totalorder %s89, %s91
    %p98 = scmp.eq.s32.totalorder %s18, 5
    %p99 = por %p97, %p98
    %p100 = scmp.ne.s32.totalorder %s91, %s92
    %p101 = scmp.eq.s32.totalorder %s18, 0
    %p102 = por %p100, %p101
    %p103 = scmp.ne.s32.totalorder %s91, %s92
    %p104 = scmp.eq.s32.totalorder %s19, 5
    %p105 = por %p103, %p104
    %p107 = scmp.ne.s32.totalorder %s92, %s106
    %p108 = scmp.eq.s32.totalorder %s19, 0
    %p109 = por %p107, %p108
    %s111 = sadd.s32 %s110, 1
    %p114 = scmp.eq.s32.totalorder %s13, 5
    %p115 = scmp.ne.s32.totalorder %s110, %s112
    %p116 = scmp.eq.s32.totalorder %s13, 0
    %p117 = por %p115, %p116
    %p118 = scmp.ne.s32.totalorder %s110, %s112
    %p119 = scmp.eq.s32.totalorder %s18, 5
    %p120 = por %p118, %p119
    %p121 = scmp.ne.s32.totalorder %s112, %s113
    %p122 = scmp.eq.s32.totalorder %s18, 0
    %p123 = por %p121, %p122
    %p124 = scmp.ne.s32.totalorder %s112, %s113
    %p125 = scmp.eq.s32.totalorder %s19, 5
    %p126 = por %p124, %p125
    %p128 = scmp.ne.s32.totalorder %s113, %s127
    %p129 = scmp.eq.s32.totalorder %s19, 0
    %p130 = por %p128, %p129
    %s132 = sadd.s32 %s131, 1
    %p135 = scmp.eq.s32.totalorder %s13, 5
    %p136 = scmp.ne.s32.totalorder %s131, %s133
    %p137 = scmp.eq.s32.totalorder %s13, 0
    %p138 = por %p136, %p137
    %p139 = scmp.ne.s32.totalorder %s131, %s133
    %p140 = scmp.eq.s32.totalorder %s18, 5
    %p141 = por %p139, %p140
    %p142 = scmp.ne.s32.totalorder %s133, %s134
    %p143 = scmp.eq.s32.totalorder %s18, 0
    %p144 = por %p142, %p143
    %p145 = scmp.ne.s32.totalorder %s133, %s134
    %p146 = scmp.eq.s32.totalorder %s19, 5
    %p147 = por %p145, %p146
    %p149 = scmp.ne.s32.totalorder %s134, %s148
    %p150 = scmp.eq.s32.totalorder %s19, 0
    %p151 = por %p149, %p150
    %s153 = sadd.s32 %s152, 1
    %p156 = scmp.eq.s32.totalorder %s13, 5
    %p157 = scmp.ne.s32.totalorder %s152, %s154
    %p158 = scmp.eq.s32.totalorder %s13, 0
    %p159 = por %p157, %p158
    %p160 = scmp.ne.s32.totalorder %s152, %s154
    %p161 = scmp.eq.s32.totalorder %s18, 5
    %p162 = por %p160, %p161
    %p163 = scmp.ne.s32.totalorder %s154, %s155
    %p164 = scmp.eq.s32.totalorder %s18, 0
    %p165 = por %p163, %p164
    %p166 = scmp.ne.s32.totalorder %s154, %s155
    %p167 = scmp.eq.s32.totalorder %s19, 5
    %p168 = por %p166, %p167
    %p170 = scmp.ne.s32.totalorder %s155, %s169
    %p171 = scmp.eq.s32.totalorder %s19, 0
    %p172 = por %p170, %p171
    %s174 = sadd.s32 %s173, 1
    %p177 = scmp.eq.s32.totalorder %s13, 5
    %p178 = scmp.ne.s32.totalorder %s173, %s175
    %p179 = scmp.eq.s32.totalorder %s13, 0
    %p180 = por %p178, %p179
    %p181 = scmp.ne.s32.totalorder %s173, %s175
    %p182 = scmp.eq.s32.totalorder %s18, 5
    %p183 = por %p181, %p182
    %p184 = scmp.ne.s32.totalorder %s175, %s176
    %p185 = scmp.eq.s32.totalorder %s18, 0
    %p186 = por %p184, %p185
    %p187 = scmp.ne.s32.totalorder %s175, %s176
    %p188 = scmp.eq.s32.totalorder %s19, 5
    %p189 = por %p187, %p188
    %p191 = scmp.ne.s32.totalorder %s176, %s190
    %p192 = scmp.eq.s32.totalorder %s19, 0
    %p193 = por %p191, %p192
    %s194 = ssub.s32 %s20, %s32
    %s195 = ssub.s32 %s21, %s28
    %s196 = sor.u32 %s194, %s195
    %p197 = scmp.eq.s32.totalorder %s196, 0
    %s199 = sadd.s32 %s198, 1
    %s200 = scalar_select %p197, %s198, %s199
    %p203 = pneg %p197
    %p204 = scmp.eq.s32.totalorder %s13, 5
    %p205 = por %p203, %p204
    %p206 = scmp.ne.s32.totalorder %s198, %s201
    %p207 = scmp.eq.s32.totalorder %s13, 0
    %p208 = por %p206, %p207
    %p209 = scmp.ne.s32.totalorder %s198, %s201
    %p210 = scmp.eq.s32.totalorder %s18, 5
    %p211 = por %p209, %p210
    %p212 = scmp.ne.s32.totalorder %s201, %s202
    %p213 = scmp.eq.s32.totalorder %s18, 0
    %p214 = por %p212, %p213
    %p215 = scmp.ne.s32.totalorder %s201, %s202
    %p216 = scmp.eq.s32.totalorder %s19, 5
    %p217 = por %p215, %p216
    %p219 = scmp.ne.s32.totalorder %s202, %s218
    %p220 = scmp.eq.s32.totalorder %s19, 0
    %p221 = por %p219, %p220
    %p222 = scmp.le.s32.totalorder 1, %s13
    %p223 = scmp.lt.s32.totalorder %s13, 7
    %p224 = pnand %p222, %p223
    %p225 = pneg %p224
    // Predicated region
    $region9: #{tpu_custom_call.1} parent=5 // pred_check
      _
    $region10: #{tpu_custom_call.1} parent=5 // pred_check_branch
      %227 = sbr.rel (%p224) target = $region12
    $region11: #{tpu_custom_call.1} parent=5 // pred_region
      %s228 = ssub.s32 %s13, 1
      // Predicated region
      $region13: #{tpu_custom_call.1} parent=11 // pred_check
        %p229 = pneg %p102
      $region14: #{tpu_custom_call.1} parent=11 // pred_check_branch
        %231 = sbr.rel (%p229) target = $region16
      $region15: #{tpu_custom_call.1} parent=11 // pred_region
        _
      $region16: #{tpu_custom_call.1} parent=11 // pred_fallthru
        _
      // Predicated region
      $region17: #{tpu_custom_call.1} parent=11 // pred_check
        %p232 = pneg %p123
      $region18: #{tpu_custom_call.1} parent=11 // pred_check_branch
        %234 = sbr.rel (%p232) target = $region20
      $region19: #{tpu_custom_call.1} parent=11 // pred_region
        _
      $region20: #{tpu_custom_call.1} parent=11 // pred_fallthru
        _
      // Predicated region
      $region21: #{tpu_custom_call.1} parent=11 // pred_check
        %p235 = pneg %p144
      $region22: #{tpu_custom_call.1} parent=11 // pred_check_branch
        %237 = sbr.rel (%p235) target = $region24
      $region23: #{tpu_custom_call.1} parent=11 // pred_region
        _
      $region24: #{tpu_custom_call.1} parent=11 // pred_fallthru
        _
      // Predicated region
      $region25: #{tpu_custom_call.1} parent=11 // pred_check
        %p238 = pneg %p165
      $region26: #{tpu_custom_call.1} parent=11 // pred_check_branch
        %240 = sbr.rel (%p238) target = $region28
      $region27: #{tpu_custom_call.1} parent=11 // pred_region
        _
      $region28: #{tpu_custom_call.1} parent=11 // pred_fallthru
        _
      // Predicated region
      $region29: #{tpu_custom_call.1} parent=11 // pred_check
        %p241 = pneg %p186
      $region30: #{tpu_custom_call.1} parent=11 // pred_check_branch
        %243 = sbr.rel (%p241) target = $region32
      $region31: #{tpu_custom_call.1} parent=11 // pred_region
        _
      $region32: #{tpu_custom_call.1} parent=11 // pred_fallthru
        _
    $region12: #{tpu_custom_call.1} parent=5 // pred_fallthru
      _
    %p244 = scmp.lt.s32.totalorder %s13, 6
    // Predicated region
    $region33: #{tpu_custom_call.1} parent=5 // pred_check
      %p245 = pneg %p244
    $region34: #{tpu_custom_call.1} parent=5 // pred_check_branch
      %247 = sbr.rel (%p245) target = $region36
    $region35: #{tpu_custom_call.1} parent=5 // pred_region
      // Predicated region
      $region37: #{tpu_custom_call.1} parent=35 // pred_check
        %p248 = pneg %p47
      $region38: #{tpu_custom_call.1} parent=35 // pred_check_branch
        %250 = sbr.rel (%p248) target = $region40
      $region39: #{tpu_custom_call.1} parent=35 // pred_region
        %s251 = smul.u32 8, %s21
        %p252 = scmp.lt.s32.totalorder %s20, 1
        %s253 = scalar_select %p252, %s20, 1
        %p254 = scmp.lt.s32.totalorder %s251, 23
        %s255 = scalar_select %p254, %s251, 23
        %s256 = smul.addr %s253, 24
        %s257 = sadd.s32 %s255, %s256
        %s258 = smul.addr %s257, 4
        %s259 = scalar_lea.vmem %s0, %s258
        %s260 = smul.u32 8, %s21
      $region40: #{tpu_custom_call.1} parent=35 // pred_fallthru
        _
      // Predicated region
      $region41: #{tpu_custom_call.1} parent=35 // pred_check
        %p261 = pneg %p75
      $region42: #{tpu_custom_call.1} parent=35 // pred_check_branch
        %263 = sbr.rel (%p261) target = $region44
      $region43: #{tpu_custom_call.1} parent=35 // pred_region
        %p264 = scmp.lt.s32.totalorder %s20, 1
        %s265 = scalar_select %p264, %s20, 1
        %p266 = scmp.lt.s32.totalorder %s21, 2
        %s267 = scalar_select %p266, %s21, 2
        %s268 = smul.addr %s265, 3
        %s269 = sadd.s32 %s267, %s268
        %s270 = scalar_lea.vmem %s1, %s269
      $region44: #{tpu_custom_call.1} parent=35 // pred_fallthru
        _
    $region36: #{tpu_custom_call.1} parent=5 // pred_fallthru
      _
    %p271 = scmp.le.s32.totalorder 1, %s13
    %p272 = scmp.lt.s32.totalorder %s13, 7
    %p273 = pnand %p271, %p272
    %p274 = pneg %p273
    // Predicated region
    $region45: #{tpu_custom_call.1} parent=5 // pred_check
      _
    $region46: #{tpu_custom_call.1} parent=5 // pred_check_branch
      %276 = sbr.rel (%p273) target = $region48
    $region47: #{tpu_custom_call.1} parent=5 // pred_region
      %s277 = ssub.s32 %s13, 1
      %s278 = smul.u32 8, %s23
      %p279 = scmp.lt.s32.totalorder %s22, 1
      %s280 = scalar_select %p279, %s22, 1
      %p281 = scmp.lt.s32.totalorder %s278, 23
      %s282 = scalar_select %p281, %s278, 23
      %s283 = smul.addr %s280, 24
      %s284 = sadd.s32 %s282, %s283
      %s285 = smul.addr %s284, 4
      %s286 = scalar_lea.vmem %s0, %s285
      %p287 = pneg %p53
      %p288 = pneg %p50
      %p289 = scmp.lt.s32.totalorder %s22, 1
      %s290 = scalar_select %p289, %s22, 1
      %p291 = scmp.lt.s32.totalorder %s23, 2
      %s292 = scalar_select %p291, %s23, 2
      %s293 = smul.addr %s290, 3
      %s294 = sadd.s32 %s292, %s293
      %s295 = scalar_lea.vmem %s1, %s294
      %p296 = pneg %p81
      %p297 = pneg %p78
      %p298 = pneg %p102
      %p299 = pneg %p99
      %p300 = pneg %p123
      %p301 = pneg %p120
      %p302 = pneg %p144
      %p303 = pneg %p141
      %p304 = pneg %p165
      %p305 = pneg %p162
      %p306 = pneg %p186
      %p307 = pneg %p183
      %p308 = pneg %p214
      %p309 = pneg %p211
      %s310 = smul.u32 8, %s23
      %p311 = scmp.lt.s32.totalorder %s22, 1
      %s312 = scalar_select %p311, %s22, 1
      %p313 = scmp.lt.s32.totalorder %s310, 23
      %s314 = scalar_select %p313, %s310, 23
      %s315 = smul.addr %s312, 24
      %s316 = sadd.s32 %s314, %s315
      %s317 = smul.addr %s316, 4
      %s318 = scalar_lea.vmem %s7, %s317
      %s319 = smul.u32 8, %s23
      %p320 = scmp.lt.s32.totalorder %s22, 1
      %s321 = scalar_select %p320, %s22, 1
      %p322 = scmp.lt.s32.totalorder %s319, 23
      %s323 = scalar_select %p322, %s319, 23
      %s324 = smul.addr %s321, 24
      %s325 = sadd.s32 %s323, %s324
      %s326 = smul.addr %s325, 4
      %s327 = scalar_lea.vmem %s0, %s326
      %s328 = smul.u32 8, %s23
      %p329 = scmp.lt.s32.totalorder %s22, 1
      %s330 = scalar_select %p329, %s22, 1
      %p331 = scmp.lt.s32.totalorder %s23, 2
      %s332 = scalar_select %p331, %s23, 2
      %s333 = smul.addr %s330, 3
      %s334 = sadd.s32 %s332, %s333
      %s335 = scalar_lea.vmem %s1, %s334
      %s336 = smul.u32 8, %s23
      %p337 = scmp.lt.s32.totalorder %s22, 1
      %s338 = scalar_select %p337, %s22, 1
      %p339 = scmp.lt.s32.totalorder %s336, 23
      %s340 = scalar_select %p339, %s336, 23
      %s341 = smul.addr %s338, 24
      %s342 = sadd.s32 %s340, %s341
      %s343 = smul.addr %s342, 4
      %s344 = scalar_lea.vmem %s7, %s343
      %s345 = smul.u32 8, %s23
      %v347 = vld [vmem:[%s327] sm:$0xf]
      %v348 = vld [vmem:[%s327 + $0x4] sm:$0xf]
      %v349 = vld [vmem:[%s327 + $0x8] sm:$0xf]
      %v350 = vld [vmem:[%s327 + $0xc] sm:$0xf]
      %v351 = vld [vmem:[%s327 + $0x10] sm:$0xf]
      %v352 = vld [vmem:[%s327 + $0x14] sm:$0xf]
      %v353 = vld [vmem:[%s327 + $0x18] sm:$0xf]
      %v354 = vld [vmem:[%s327 + $0x1c] sm:$0xf]
      %v355 = vld [vmem:[%s335] sm:$0x1]
      %v356 = vunpack.c.l.bf16 %v355
      %v357 = vunpack.c.l.bf16 %v347
      %v358 = vunpack.c.l.bf16 %v348
      %v359 = vunpack.c.l.bf16 %v349
      %v360 = vunpack.c.l.bf16 %v350
      %v361 = vunpack.c.l.bf16 %v351
      %v362 = vunpack.c.l.bf16 %v352
      %v363 = vunpack.c.l.bf16 %v353
      %v364 = vunpack.c.l.bf16 %v354
      %vm373 = vcmask 1040384
      %v374 = vrot.slane %v357, 7
      %v375 = vrot.slane %v358, 7
      %v376 = vsel %vm373, %v374, %v375
      %v377 = vrot.slane %v359, 7
      %v378 = vsel %vm373, %v375, %v377
      %v379 = vrot.slane %v360, 7
      %v380 = vsel %vm373, %v377, %v379
      %v381 = vrot.slane %v361, 7
      %v382 = vsel %vm373, %v379, %v381
      %v383 = vrot.slane %v362, 7
      %v384 = vsel %vm373, %v381, %v383
      %v385 = vrot.slane %v363, 7
      %v386 = vsel %vm373, %v383, %v385
      %v387 = vrot.slane %v364, 7
      %v388 = vsel %vm373, %v385, %v387
      %v398 = vsel %vm373, %v356, %v374
      %v399 = vsel %vm373, %v387, %v356
      %vm400 = vcmp.ge.f32.partialorder %v398, 0.0
      %vm401 = vcmp.ge.f32.partialorder %v376, 0.0
      %vm402 = vcmp.ge.f32.partialorder %v378, 0.0
      %vm403 = vcmp.ge.f32.partialorder %v380, 0.0
      %vm404 = vcmp.ge.f32.partialorder %v382, 0.0
      %vm405 = vcmp.ge.f32.partialorder %v384, 0.0
      %vm406 = vcmp.ge.f32.partialorder %v386, 0.0
      %vm407 = vcmp.ge.f32.partialorder %v388, 0.0
      %vm408 = vcmp.ge.f32.partialorder %v399, 0.0
      %v409 = vmul.f32 %v398, 0.2
      %v410 = vmul.f32 %v376, 0.2
      %v411 = vmul.f32 %v378, 0.2
      %v412 = vmul.f32 %v380, 0.2
      %v413 = vmul.f32 %v382, 0.2
      %v414 = vmul.f32 %v384, 0.2
      %v415 = vmul.f32 %v386, 0.2
      %v416 = vmul.f32 %v388, 0.2
      %v417 = vmul.f32 %v399, 0.2
      %v418 = vsel %vm400, %v398, %v409
      %v419 = vsel %vm401, %v376, %v410
      %v420 = vsel %vm402, %v378, %v411
      %v421 = vsel %vm403, %v380, %v412
      %v422 = vsel %vm404, %v382, %v413
      %v423 = vsel %vm405, %v384, %v414
      %v424 = vsel %vm406, %v386, %v415
      %v425 = vsel %vm407, %v388, %v416
      %v426 = vsel %vm408, %v399, %v417
      %vm436 = vcmask 1046528
      %v437 = vrot.slane %v418, 1
      %v438 = vrot.slane %v419, 1
      %v439 = vsel %vm436, %v437, %v438
      %v440 = vrot.slane %v420, 1
      %v441 = vsel %vm436, %v438, %v440
      %v442 = vrot.slane %v421, 1
      %v443 = vsel %vm436, %v440, %v442
      %v444 = vrot.slane %v422, 1
      %v445 = vsel %vm436, %v442, %v444
      %v446 = vrot.slane %v423, 1
      %v447 = vsel %vm436, %v444, %v446
      %v448 = vrot.slane %v424, 1
      %v449 = vsel %vm436, %v446, %v448
      %v450 = vrot.slane %v425, 1
      %v451 = vsel %vm436, %v448, %v450
      %v452 = vrot.slane %v426, 1
      %v453 = vsel %vm436, %v450, %v452
      %454 = vrot.lane.b32.xlu0 %v439, 32
      %v455 = vpop.permute.xlu0 %454
      %456 = vrot.lane.b32.xlu0 %v441, 32
      %v457 = vpop.permute.xlu0 %456
      %458 = vrot.lane.b32.xlu0 %v443, 32
      %v459 = vpop.permute.xlu0 %458
      %460 = vrot.lane.b32.xlu0 %v445, 32
      %v461 = vpop.permute.xlu0 %460
      %462 = vrot.lane.b32.xlu0 %v447, 32
      %v463 = vpop.permute.xlu0 %462
      %464 = vrot.lane.b32.xlu0 %v449, 32
      %v465 = vpop.permute.xlu0 %464
      %466 = vrot.lane.b32.xlu0 %v451, 32
      %v467 = vpop.permute.xlu0 %466
      %468 = vrot.lane.b32.xlu0 %v453, 32
      %v469 = vpop.permute.xlu0 %468
      %vm478 = vcmask 1045504
      %v479 = vrot.slane %v418, 2
      %v480 = vrot.slane %v419, 2
      %v481 = vsel %vm478, %v479, %v480
      %v482 = vrot.slane %v420, 2
      %v483 = vsel %vm478, %v480, %v482
      %v484 = vrot.slane %v421, 2
      %v485 = vsel %vm478, %v482, %v484
      %v486 = vrot.slane %v422, 2
      %v487 = vsel %vm478, %v484, %v486
      %v488 = vrot.slane %v423, 2
      %v489 = vsel %vm478, %v486, %v488
      %v490 = vrot.slane %v424, 2
      %v491 = vsel %vm478, %v488, %v490
      %v492 = vrot.slane %v425, 2
      %v493 = vsel %vm478, %v490, %v492
      %v494 = vrot.slane %v426, 2
      %v495 = vsel %vm478, %v492, %v494
      %496 = vrot.lane.b32.xlu0 %v481, 64
      %v497 = vpop.permute.xlu0 %496
      %498 = vrot.lane.b32.xlu0 %v483, 64
      %v499 = vpop.permute.xlu0 %498
      %500 = vrot.lane.b32.xlu0 %v485, 64
      %v501 = vpop.permute.xlu0 %500
      %502 = vrot.lane.b32.xlu0 %v487, 64
      %v503 = vpop.permute.xlu0 %502
      %504 = vrot.lane.b32.xlu0 %v489, 64
      %v505 = vpop.permute.xlu0 %504
      %506 = vrot.lane.b32.xlu0 %v491, 64
      %v507 = vpop.permute.xlu0 %506
      %508 = vrot.lane.b32.xlu0 %v493, 64
      %v509 = vpop.permute.xlu0 %508
      %510 = vrot.lane.b32.xlu0 %v495, 64
      %v511 = vpop.permute.xlu0 %510
      %vm520 = vcmask 261120
      %v521 = vsel %vm520, %v418, %v455
      %v522 = vsel %vm520, %v419, %v457
      %v523 = vsel %vm520, %v420, %v459
      %v524 = vsel %vm520, %v421, %v461
      %v525 = vsel %vm520, %v422, %v463
      %v526 = vsel %vm520, %v423, %v465
      %v527 = vsel %vm520, %v424, %v467
      %v528 = vsel %vm520, %v425, %v469
      %vm529 = vcmask 523264
      %v530 = vsel %vm529, %v521, %v497
      %v531 = vsel %vm529, %v522, %v499
      %v532 = vsel %vm529, %v523, %v501
      %v533 = vsel %vm529, %v524, %v503
      %v534 = vsel %vm529, %v525, %v505
      %v535 = vsel %vm529, %v526, %v507
      %v536 = vsel %vm529, %v527, %v509
      %v537 = vsel %vm529, %v528, %v511
      %v538 = vpack.c.bf16 %v531, %v530
      %v539 = vpack.c.bf16 %v533, %v532
      %v540 = vpack.c.bf16 %v535, %v534
      %v541 = vpack.c.bf16 %v537, %v536
      %v542 = vld [vmem:[%s2] sm:$0xf]
      %v543 = vld [vmem:[%s2 + $0x4] sm:$0xf]
      %v544 = vld [vmem:[%s2 + $0x8] sm:$0xf]
      %v545 = vld [vmem:[%s2 + $0xc] sm:$0xf]
      %v546 = vld [vmem:[%s2 + $0x10] sm:$0xf]
      %v547 = vld [vmem:[%s2 + $0x14] sm:$0xf]
      %v548 = vld [vmem:[%s2 + $0x18] sm:$0xf]
      %v549 = vld [vmem:[%s2 + $0x1c] sm:$0xf]
      %v550 = vld [vmem:[%s2 + $0x20] sm:$0xf]
      %v551 = vld [vmem:[%s2 + $0x24] sm:$0xf]
      %v552 = vld [vmem:[%s2 + $0x28] sm:$0xf]
      %v553 = vld [vmem:[%s2 + $0x2c] sm:$0xf]
      %v554 = vld [vmem:[%s3] sm:$0x1]
      %v556 = vperm.slane %v554, 0
      %v570 = vunpack.c.l.b16 %v542
      %v571 = vunpack.c.l.b16 %v543
      %v572 = vunpack.c.l.b16 %v544
      %v573 = vunpack.c.l.b16 %v545
      %v574 = vunpack.c.l.b16 %v546
      %v575 = vunpack.c.l.b16 %v547
      %v576 = vunpack.c.l.b16 %v548
      %v577 = vunpack.c.l.b16 %v549
      %v578 = vunpack.c.l.b16 %v550
      %v579 = vunpack.c.l.b16 %v551
      %v580 = vunpack.c.l.b16 %v552
      %v581 = vunpack.c.l.b16 %v553
      %v582 = vpack.c.b16 %v571, %v570
      %v583 = vpack.c.b16 %v573, %v572
      %v584 = vpack.c.b16 %v575, %v574
      %v585 = vpack.c.b16 %v577, %v576
      %v586 = vpack.c.b16 %v579, %v578
      %v587 = vpack.c.b16 %v581, %v580
      %vm594 = vcmask 785408
      %v596 = vsel %vm594, %v538, 0
      %v599 = vsel %vm594, %v539, 0
      %v602 = vsel %vm594, %v540, 0
      %v605 = vsel %vm594, %v541, 0
      %607 = vmatpush.bf16.msra.mxu0 0
      %608 = vmatpush.bf16.msra.mxu0 0
      %609 = vmatpush.bf16.msra.mxu0 %v587
      %610 = vmatpush.bf16.msra.mxu0 %v586
      %611 = vmatpush.bf16.msra.mxu0 %v585
      %612 = vmatpush.bf16.msra.mxu0 %v584
      %613 = vmatpush.bf16.msra.mxu0 %v583
      %614 = vmatpush.bf16.msra.mxu0 %v582
      %615 = vmatmul.bf16.gmra.mxu0 %v596
      %v616 = vpop.f32.mrf.mxu0
      %v617 = vadd.f32 %v556, %v616
      %v618 = vpop.f32.mrf.mxu0
      %v619 = vadd.f32 %v556, %v618
      %620 = vmatmul.bf16.gmra.mxu0 %v599
      %v621 = vpop.f32.mrf.mxu0
      %v622 = vadd.f32 %v556, %v621
      %v623 = vpop.f32.mrf.mxu0
      %v624 = vadd.f32 %v556, %v623
      %625 = vmatmul.bf16.gmra.mxu0 %v602
      %v626 = vpop.f32.mrf.mxu0
      %v627 = vadd.f32 %v556, %v626
      %v628 = vpop.f32.mrf.mxu0
      %v629 = vadd.f32 %v556, %v628
      %630 = vmatmul.bf16.gmra.mxu0 %v605
      %v631 = vpop.f32.mrf.mxu0
      %v632 = vadd.f32 %v556, %v631
      %v633 = vpop.f32.mrf.mxu0
      %v634 = vadd.f32 %v556, %v633
      %635 = vdwg.mxu0
      %vm636 = vcmp.ge.f32.partialorder %v617, 0.0
      %vm637 = vcmp.ge.f32.partialorder %v619, 0.0
      %vm638 = vcmp.ge.f32.partialorder %v622, 0.0
      %vm639 = vcmp.ge.f32.partialorder %v624, 0.0
      %vm640 = vcmp.ge.f32.partialorder %v627, 0.0
      %vm641 = vcmp.ge.f32.partialorder %v629, 0.0
      %vm642 = vcmp.ge.f32.partialorder %v632, 0.0
      %vm643 = vcmp.ge.f32.partialorder %v634, 0.0
      %v644 = vmul.f32 %v617, 0.2
      %v645 = vmul.f32 %v619, 0.2
      %v646 = vmul.f32 %v622, 0.2
      %v647 = vmul.f32 %v624, 0.2
      %v648 = vmul.f32 %v627, 0.2
      %v649 = vmul.f32 %v629, 0.2
      %v650 = vmul.f32 %v632, 0.2
      %v651 = vmul.f32 %v634, 0.2
      %v652 = vsel %vm636, %v617, %v644
      %v653 = vsel %vm637, %v619, %v645
      %v654 = vsel %vm638, %v622, %v646
      %v655 = vsel %vm639, %v624, %v647
      %v656 = vsel %vm640, %v627, %v648
      %v657 = vsel %vm641, %v629, %v649
      %v658 = vsel %vm642, %v632, %v650
      %v659 = vsel %vm643, %v634, %v651
      %v660 = vpack.c.bf16 %v653, %v652
      %v661 = vpack.c.bf16 %v655, %v654
      %v662 = vpack.c.bf16 %v657, %v656
      %v663 = vpack.c.bf16 %v659, %v658
      %v664 = vld [vmem:[%s4] sm:$0xf]
      %v665 = vld [vmem:[%s4 + $0x4] sm:$0xf]
      %v666 = vld [vmem:[%s4 + $0x8] sm:$0xf]
      %v667 = vld [vmem:[%s4 + $0xc] sm:$0xf]
      %v672 = vunpack.c.l.b16 %v664
      %v673 = vunpack.c.l.b16 %v665
      %v674 = vunpack.c.l.b16 %v666
      %v675 = vunpack.c.l.b16 %v667
      %v676 = vpack.c.b16 %v673, %v672
      %v677 = vpack.c.b16 %v675, %v674
      %v681 = vsel %vm520, %v660, 0
      %v684 = vsel %vm520, %v661, 0
      %v687 = vsel %vm520, %v662, 0
      %v690 = vsel %vm520, %v663, 0
      %692 = vmatpush.bf16.msra.mxu0 0
      %693 = vmatpush.bf16.msra.mxu0 0
      %694 = vmatpush.bf16.msra.mxu0 0
      %695 = vmatpush.bf16.msra.mxu0 0
      %696 = vmatpush.bf16.msra.mxu0 0
      %697 = vmatpush.bf16.msra.mxu0 0
      %698 = vmatpush.bf16.msra.mxu0 %v677
      %699 = vmatpush.bf16.msra.mxu0 %v676
      %700 = vmatmul.bf16.gmra.mxu0 %v681
      %v701 = vpop.f32.mrf.mxu0
      %v702 = vadd.f32 0.0, %v701
      %v703 = vpop.f32.mrf.mxu0
      %v704 = vadd.f32 0.0, %v703
      %705 = vmatmul.bf16.gmra.mxu0 %v684
      %v706 = vpop.f32.mrf.mxu0
      %v707 = vadd.f32 0.0, %v706
      %v708 = vpop.f32.mrf.mxu0
      %v709 = vadd.f32 0.0, %v708
      %710 = vmatmul.bf16.gmra.mxu0 %v687
      %v711 = vpop.f32.mrf.mxu0
      %v712 = vadd.f32 0.0, %v711
      %v713 = vpop.f32.mrf.mxu0
      %v714 = vadd.f32 0.0, %v713
      %715 = vmatmul.bf16.gmra.mxu0 %v690
      %v716 = vpop.f32.mrf.mxu0
      %v717 = vadd.f32 0.0, %v716
      %v718 = vpop.f32.mrf.mxu0
      %v719 = vadd.f32 0.0, %v718
      %720 = vdwg.mxu0
      %v721 = vld [vmem:[%s5] sm:$0xf]
      %v722 = vld [vmem:[%s5 + $0x4] sm:$0xf]
      %v723 = vld [vmem:[%s5 + $0x8] sm:$0xf]
      %v724 = vld [vmem:[%s5 + $0xc] sm:$0xf]
      %v733 = vunpack.c.l.b16 %v347
      %v734 = vunpack.c.l.b16 %v348
      %v735 = vunpack.c.l.b16 %v349
      %v736 = vunpack.c.l.b16 %v350
      %v737 = vunpack.c.l.b16 %v351
      %v738 = vunpack.c.l.b16 %v352
      %v739 = vunpack.c.l.b16 %v353
      %v740 = vunpack.c.l.b16 %v354
      %v741 = vpack.c.b16 %v734, %v733
      %v742 = vpack.c.b16 %v736, %v735
      %v743 = vpack.c.b16 %v738, %v737
      %v744 = vpack.c.b16 %v740, %v739
      %v749 = vunpack.c.l.b16 %v721
      %v750 = vunpack.c.l.b16 %v722
      %v751 = vunpack.c.l.b16 %v723
      %v752 = vunpack.c.l.b16 %v724
      %v753 = vpack.c.b16 %v750, %v749
      %v754 = vpack.c.b16 %v752, %v751
      %v758 = vsel %vm520, %v741, 0
      %v761 = vsel %vm520, %v742, 0
      %v764 = vsel %vm520, %v743, 0
      %v767 = vsel %vm520, %v744, 0
      %769 = vmatpush.bf16.msra.mxu0 0
      %770 = vmatpush.bf16.msra.mxu0 0
      %771 = vmatpush.bf16.msra.mxu0 0
      %772 = vmatpush.bf16.msra.mxu0 0
      %773 = vmatpush.bf16.msra.mxu0 0
      %774 = vmatpush.bf16.msra.mxu0 0
      %775 = vmatpush.bf16.msra.mxu0 %v754
      %776 = vmatpush.bf16.msra.mxu0 %v753
      %777 = vmatmul.bf16.gmra.mxu0 %v758
      %v778 = vpop.f32.mrf.mxu0
      %v779 = vadd.f32 %v702, %v778
      %v780 = vpop.f32.mrf.mxu0
      %v781 = vadd.f32 %v704, %v780
      %782 = vmatmul.bf16.gmra.mxu0 %v761
      %v783 = vpop.f32.mrf.mxu0
      %v784 = vadd.f32 %v707, %v783
      %v785 = vpop.f32.mrf.mxu0
      %v786 = vadd.f32 %v709, %v785
      %787 = vmatmul.bf16.gmra.mxu0 %v764
      %v788 = vpop.f32.mrf.mxu0
      %v789 = vadd.f32 %v712, %v788
      %v790 = vpop.f32.mrf.mxu0
      %v791 = vadd.f32 %v714, %v790
      %792 = vmatmul.bf16.gmra.mxu0 %v767
      %v793 = vpop.f32.mrf.mxu0
      %v794 = vadd.f32 %v717, %v793
      %v795 = vpop.f32.mrf.mxu0
      %v796 = vadd.f32 %v719, %v795
      %797 = vdwg.mxu0
      %v798 = vld [vmem:[%s6] sm:$0x1]
      %v800 = vperm.slane %v798, 0
      %v802 = vadd.f32 %v779, %v800
      %v803 = vadd.f32 %v781, %v800
      %v804 = vadd.f32 %v784, %v800
      %v805 = vadd.f32 %v786, %v800
      %v806 = vadd.f32 %v789, %v800
      %v807 = vadd.f32 %v791, %v800
      %v808 = vadd.f32 %v794, %v800
      %v809 = vadd.f32 %v796, %v800
      %v810 = vpack.c.bf16 %v802, %v802
      %v811 = vpack.c.bf16 %v803, %v803
      %v812 = vpack.c.bf16 %v804, %v804
      %v813 = vpack.c.bf16 %v805, %v805
      %v814 = vpack.c.bf16 %v806, %v806
      %v815 = vpack.c.bf16 %v807, %v807
      %v816 = vpack.c.bf16 %v808, %v808
      %v817 = vpack.c.bf16 %v809, %v809
      %vm818 = vcmask 257024
      %819 = vst.msk [vmem:[%s344] sm:$0xf] %vm818, %v810
      %820 = vst.msk [vmem:[%s344 + $0x4] sm:$0xf] %vm818, %v811
      %821 = vst.msk [vmem:[%s344 + $0x8] sm:$0xf] %vm818, %v812
      %822 = vst.msk [vmem:[%s344 + $0xc] sm:$0xf] %vm818, %v813
      %823 = vst.msk [vmem:[%s344 + $0x10] sm:$0xf] %vm818, %v814
      %824 = vst.msk [vmem:[%s344 + $0x14] sm:$0xf] %vm818, %v815
      %825 = vst.msk [vmem:[%s344 + $0x18] sm:$0xf] %vm818, %v816
      %826 = vst.msk [vmem:[%s344 + $0x1c] sm:$0xf] %vm818, %v817
      %s827 = smul.u32 8, %s23
      %p828 = scmp.lt.s32.totalorder %s22, 1
      %s829 = scalar_select %p828, %s22, 1
      %p830 = scmp.lt.s32.totalorder %s827, 23
      %s831 = scalar_select %p830, %s827, 23
      %s832 = smul.addr %s829, 24
      %s833 = sadd.s32 %s831, %s832
      %s834 = smul.addr %s833, 4
      %s835 = scalar_lea.vmem %s7, %s834
      // Predicated region
      $region49: #{tpu_custom_call.1} parent=47 // pred_check
        %p836 = pneg %p211
      $region50: #{tpu_custom_call.1} parent=47 // pred_check_branch
        %838 = sbr.rel (%p836) target = $region52
      $region51: #{tpu_custom_call.1} parent=47 // pred_region
        %s839 = smul.u32 8, %s23
      $region52: #{tpu_custom_call.1} parent=47 // pred_fallthru
        _
    $region48: #{tpu_custom_call.1} parent=5 // pred_fallthru
      _
    %p840 = scmp.le.s32.totalorder 2, %s13
    // Predicated region
    $region53: #{tpu_custom_call.1} parent=5 // pred_check
      %p841 = pneg %p840
    $region54: #{tpu_custom_call.1} parent=5 // pred_check_branch
      %843 = sbr.rel (%p841) target = $region56
    $region55: #{tpu_custom_call.1} parent=5 // pred_region
      %s844 = ssub.s32 %s13, 2
      // Predicated region
      $region57: #{tpu_custom_call.1} parent=55 // pred_check
        %p845 = pneg %p217
      $region58: #{tpu_custom_call.1} parent=55 // pred_check_branch
        %847 = sbr.rel (%p845) target = $region60
      $region59: #{tpu_custom_call.1} parent=55 // pred_region
        %s848 = smul.u32 8, %s25
        %p849 = scmp.lt.s32.totalorder %s24, 1
        %s850 = scalar_select %p849, %s24, 1
        %p851 = scmp.lt.s32.totalorder %s848, 23
        %s852 = scalar_select %p851, %s848, 23
        %s853 = smul.addr %s850, 24
        %s854 = sadd.s32 %s852, %s853
        %s855 = smul.addr %s854, 4
        %s856 = scalar_lea.vmem %s7, %s855
      $region60: #{tpu_custom_call.1} parent=55 // pred_fallthru
        _
    $region56: #{tpu_custom_call.1} parent=5 // pred_fallthru
      _
  $region6: #{tpu_custom_call.1} parent=0 // loop_footer
    %s17 = sadd.s32 1, %s13
  $region7: #{tpu_custom_call.1} parent=0 // loop_footer_branch
    %12 = sbr.rel target = $region3
  $region8: #{tpu_custom_call.1} parent=0 // loop_exit
    _

</llo_original>
